<compile_context>
chip_gen: v5e
topology: v5e:2x2
jax: 0.10.0
libtpu: 0.0.40
codegen_flags: <defaults>
</compile_context>

<pallas_src>
import numpy as np
import jax
import jax.numpy as jnp
from jax import lax
from jax.experimental import pallas as pl
from jax.experimental.pallas import tpu as pltpu


# ----------------------------------------------------------------------------- helpers
def _round_up(x, m):
    return (x + m - 1) // m * m


def _erf_poly(x):
    # Abramowitz & Stegun 7.1.26, |err| < 1.5e-7 (plain VPU ops + one EUP exp).
    p = 0.3275911
    a1, a2, a3, a4, a5 = 0.254829592, -0.284496736, 1.421413741, -1.453152027, 1.061405429
    ax = jnp.abs(x)
    t = 1.0 / (1.0 + p * ax)
    poly = ((((a5 * t + a4) * t + a3) * t + a2) * t + a1) * t
    y = 1.0 - poly * jnp.exp(-ax * ax)
    return jnp.where(x >= 0, y, -y)


def _gelu_exact(x):
    return 0.5 * x * (1.0 + _erf_poly(x * 0.7071067811865476))


# ----------------------------------------------------------------------------- kernel
def _make_down_kernel(C, O, Ho, Wo, L_in, L_out, groups=8, eps=1e-5):
    cs = O // groups
    inv_count = 1.0 / float(cs * Ho * Wo)

    def kernel(x_ref, wbd_ref, fbw1_ref, kdw_ref, mg_ref, mgt_ref,
               gamma_ref, beta_ref, o_ref):
        # x_ref    : (1, 4, Ho, L_in)  stride-2 phase planes, (W, C) flattened to W*C,
        #                              zero padded to L_in lanes; phase p*2+q = x[2i+p, 2j+q]
        # wbd_ref  : (L_in, L_out)     block-diagonal 1x1-conv weight
        # fbw1_ref : (Ho, L_out)       precomputed freq_bias * w1[C] (tiled over W)
        # kdw_ref  : (9, L_out)        depthwise 3x3 weights, tiled over W
        # mg_ref   : (L_out, groups)   flat-column -> group indicator
        # mgt_ref  : (groups, L_out)   its transpose
        # gamma/beta_ref : (1, L_out)  GroupNorm affine (tiled over W)
        # o_ref    : (1, Ho, L_out)
        neg = jnp.float32(-jnp.inf)
        row_i = lax.broadcasted_iota(jnp.int32, (Ho, L_in), 0)
        col_i = lax.broadcasted_iota(jnp.int32, (Ho, L_in), 1)
        row_o = lax.broadcasted_iota(jnp.int32, (Ho, L_out), 0)
        col_o = lax.broadcasted_iota(jnp.int32, (Ho, L_out), 1)

        x00 = x_ref[0, 0]
        x01 = x_ref[0, 1]
        x10 = x_ref[0, 2]
        x11 = x_ref[0, 3]

        # ---- MaxPool2d(3, stride=2, padding=1): XLU rolls + -inf edge masks -----
        def wshift(y):            # out[:, j] = y[:, j-1] ; -inf at j == 0
            return jnp.where(col_i < C, neg, pltpu.roll(y, C, 1))

        def hshift(y):            # out[i] = y[i-1] ; -inf at i == 0
            return jnp.where(row_i == 0, neg, pltpu.roll(y, 1, 0))

        x01_w = wshift(x01)
        x11_w = wshift(x11)
        pooled = jnp.maximum(x00, x01)
        pooled = jnp.maximum(pooled, x01_w)
        pooled = jnp.maximum(pooled, x10)
        pooled = jnp.maximum(pooled, x11)
        pooled = jnp.maximum(pooled, x11_w)
        pooled = jnp.maximum(pooled, hshift(x10))
        pooled = jnp.maximum(pooled, hshift(x11))
        pooled = jnp.maximum(pooled, hshift(x11_w))          # (Ho, L_in), finite

        # ---- concat(freq_bias) + 1x1 pointwise conv: single MXU matmul ----------
        # (padded junk lanes hit zero rows of wbd, so they contribute nothing)
        y1 = jnp.dot(pooled, wbd_ref[...], preferred_element_type=jnp.float32)
        y1 = y1 + fbw1_ref[...]                               # (Ho, L_out)

        # ---- 3x3 depthwise conv, replicate padding (rolls + edge masks) ---------
        def wleft(y):             # y[:, clip(j-1)]
            return jnp.where(col_o < O, y, pltpu.roll(y, O, 1))

        def wright(y):            # y[:, clip(j+1)]
            return jnp.where(col_o >= (Wo - 1) * O, y, pltpu.roll(y, L_out - O, 1))

        def hup(y):               # y[clip(i-1)]
            return jnp.where(row_o == 0, y, pltpu.roll(y, 1, 0))

        def hdn(y):               # y[clip(i+1)]
            return jnp.where(row_o == Ho - 1, y, pltpu.roll(y, Ho - 1, 0))

        taps_w = (wleft(y1), y1, wright(y1))
        y2 = jnp.zeros((Ho, L_out), jnp.float32)
        for kh in range(3):
            for kw in range(3):
                a = taps_w[kw]
                if kh == 0:
                    a = hup(a)
                elif kh == 2:
                    a = hdn(a)
                t = kh * 3 + kw
                y2 = y2 + kdw_ref[t:t + 1, :] * a             # (Ho, L_out)

        # ---- GroupNorm(groups, O): row reduce + tiny MXU dots, folded affine ----
        rsum = jnp.sum(y2, axis=0, keepdims=True)                                   # (1, L_out)
        rsq = jnp.sum(y2 * y2, axis=0, keepdims=True)                               # (1, L_out)
        gsum = jnp.dot(rsum, mg_ref[...], preferred_element_type=jnp.float32)       # (1, groups)
        gsq = jnp.dot(rsq, mg_ref[...], preferred_element_type=jnp.float32)
        gmean = gsum * inv_count
        gvar = gsq * inv_count - gmean * gmean
        ginv = lax.rsqrt(gvar + eps)
        mean_f = jnp.dot(gmean, mgt_ref[...], preferred_element_type=jnp.float32)   # (1, L_out)
        inv_f = jnp.dot(ginv, mgt_ref[...], preferred_element_type=jnp.float32)
        scale = inv_f * gamma_ref[...]
        shift = beta_ref[...] - mean_f * scale
        y3 = y2 * scale + shift                                                     # one FMA

        # ---- GELU (exact, erf) + lane-dense store --------------------------------
        o_ref[0] = _gelu_exact(y3)

    return kernel


# ----------------------------------------------------------------------------- wrapper
def make_down_params(key, in_channels, out_channels, height):
    """Deterministic synthetic parameters (shapes match the PyTorch module)."""
    C, O, Ho = in_channels, out_channels, height
    k1, k2, k3, k4, k5 = jax.random.split(key, 5)
    # conv1.weight: torch (O, C+1, 1, 1) -> stored transposed as (C+1, O)
    w1 = jax.random.normal(k1, (C + 1, O), jnp.float32) / np.sqrt(C + 1)
    # conv2.weight: torch (O, 1, 3, 3) -> stored as (3, 3, O)
    kdw = jax.random.normal(k2, (3, 3, O), jnp.float32) * np.sqrt(2.0 / 9.0)
    # freq_bias is zeros at torch init; use random values here to exercise the path
    fb = 0.1 * jax.random.normal(k3, (Ho,), jnp.float32)
    gamma = 1.0 + 0.1 * jax.random.normal(k4, (O,), jnp.float32)
    beta = 0.1 * jax.random.normal(k5, (O,), jnp.float32)
    return dict(w1=w1, k=kdw, fb=fb, gamma=gamma, beta=beta)


def down_forward(x, params, *, groups=8):
    """x: (B, C, H, W) float32 NCHW, H and W even. Returns (B, O, H//2, W//2)."""
    B, C, H, W = x.shape
    assert H % 2 == 0 and W % 2 == 0
    Ho, Wo = H // 2, W // 2
    w1 = params["w1"]
    O = w1.shape[1]
    assert O % groups == 0, "GroupNorm(8, out_channels) requires out_channels % 8 == 0"

    L_in = _round_up(Wo * C, 128)
    L_out = _round_up(Wo * O, 128)
    # TODO(synk): the block-diagonal pointwise weight is Wo x larger than conv1.weight;
    # for production channel counts (C, O >= 128) switch to a channels-last layout with a
    # plain (Ho*Wo, C) x (C, O) MXU matmul and tile Ho for the v7x 64 MiB VMEM budget.

    # ---- stride-2 phase planes, (W, C) flattened to the lane dim, zero-padded ----
    xt = jnp.transpose(x, (0, 2, 3, 1))                                    # (B, H, W, C)
    xph = (xt.reshape(B, Ho, 2, Wo, 2, C)
             .transpose(0, 2, 4, 1, 3, 5)                                  # (B, 2, 2, Ho, Wo, C)
             .reshape(B, 4, Ho, Wo * C))
    xph = jnp.pad(xph, ((0, 0), (0, 0), (0, 0), (0, L_in - Wo * C)))

    # block-diagonal 1x1 conv weight: kron(I_Wo, w1[:C]) padded to (L_in, L_out)
    wbd = jnp.kron(jnp.eye(Wo, dtype=jnp.float32), w1[:C])
    wbd = jnp.pad(wbd, ((0, L_in - Wo * C), (0, L_out - Wo * O)))

    # freq-bias contribution of the 1x1 conv (precomputed): fb[i] * w1[C, o], tiled over W
    fbw1 = jnp.tile(params["fb"][:, None] * w1[C][None, :], (1, Wo))       # (Ho, Wo*O)
    fbw1 = jnp.pad(fbw1, ((0, 0), (0, L_out - Wo * O)))

    # depthwise weights tiled over W: kdw[kh*3+kw, w*O+o] = k[kh, kw, o]
    kdw = jnp.tile(params["k"].reshape(9, O), (1, Wo))
    kdw = jnp.pad(kdw, ((0, 0), (0, L_out - Wo * O)))

    # GroupNorm plumbing: flat-column -> group indicator and tiled affine params
    grp = (jnp.arange(Wo * O) % O) // (O // groups)
    mg = (grp[:, None] == jnp.arange(groups)[None, :]).astype(jnp.float32)  # (Wo*O, groups)
    mg = jnp.pad(mg, ((0, L_out - Wo * O), (0, 0)))
    mgt = mg.T
    gamma_f = jnp.pad(jnp.tile(params["gamma"], Wo), (0, L_out - Wo * O))[None, :]
    beta_f = jnp.pad(jnp.tile(params["beta"], Wo), (0, L_out - Wo * O))[None, :]

    kernel = _make_down_kernel(C, O, Ho, Wo, L_in, L_out, groups=groups)

    out = pl.pallas_call(
        kernel,
        out_shape=jax.ShapeDtypeStruct((B, Ho, L_out), jnp.float32),
        grid=(B,),
        in_specs=[
            pl.BlockSpec((1, 4, Ho, L_in), lambda b: (b, 0, 0, 0)),   # phase planes of batch b
            pl.BlockSpec((L_in, L_out), lambda b: (0, 0)),            # block-diag 1x1 weight
            pl.BlockSpec((Ho, L_out), lambda b: (0, 0)),              # freq-bias term
            pl.BlockSpec((9, L_out), lambda b: (0, 0)),               # depthwise weights
            pl.BlockSpec((L_out, groups), lambda b: (0, 0)),          # column -> group
            pl.BlockSpec((groups, L_out), lambda b: (0, 0)),          # group -> column
            pl.BlockSpec((1, L_out), lambda b: (0, 0)),               # gamma (tiled)
            pl.BlockSpec((1, L_out), lambda b: (0, 0)),               # beta (tiled)
        ],
        out_specs=pl.BlockSpec((1, Ho, L_out), lambda b: (b, 0, 0)),
        compiler_params=pltpu.CompilerParams(dimension_semantics=("parallel",)),
    )(xph, wbd, fbw1, kdw, mg, mgt, gamma_f, beta_f)

    out = out[:, :, :Wo * O].reshape(B, Ho, Wo, O)
    return jnp.transpose(out, (0, 3, 1, 2))                               # back to NCHW


# ----------------------------------------------------------------------------- pure-JAX reference
def down_reference(x, params):
    B, C, H, W = x.shape
    Ho, Wo = H // 2, W // 2
    O = params["w1"].shape[1]
    # MaxPool2d(3, 2, padding=1)
    mp = lax.reduce_window(
        x, -jnp.inf, lax.max,
        window_dimensions=(1, 1, 3, 3), window_strides=(1, 1, 2, 2),
        padding=((0, 0), (0, 0), (1, 1), (1, 1)))
    # concat freq_bias channel
    fbc = jnp.broadcast_to(params["fb"].reshape(1, 1, Ho, 1), (B, 1, Ho, Wo))
    cat = jnp.concatenate([mp, fbc], axis=1)
    # 1x1 conv
    y1 = jnp.einsum("bchw,co->bohw", cat, params["w1"])
    # 3x3 depthwise conv, replicate padding
    y1p = jnp.pad(y1, ((0, 0), (0, 0), (1, 1), (1, 1)), mode="edge")
    wdw = jnp.transpose(params["k"], (2, 0, 1))[:, None, :, :]            # (O,1,3,3)
    y2 = lax.conv_general_dilated(
        y1p, wdw, (1, 1), "VALID", feature_group_count=O,
        dimension_numbers=("NCHW", "OIHW", "NCHW"))
    # GroupNorm(8, O)
    cs = O // 8
    y2g = y2.reshape(B, 8, cs, Ho, Wo)
    mean = y2g.mean(axis=(2, 3, 4), keepdims=True)
    var = y2g.var(axis=(2, 3, 4), keepdims=True)
    y3 = ((y2g - mean) / jnp.sqrt(var + 1e-5)).reshape(B, O, Ho, Wo)
    y3 = y3 * params["gamma"].reshape(1, O, 1, 1) + params["beta"].reshape(1, O, 1, 1)
    return jax.nn.gelu(y3, approximate=False)


# ----------------------------------------------------------------------------- main
if __name__ == "__main__":
    B, C, H, W = 2, 4, 16, 16
    O = 8                       # out_channels (multiple of 8 for GroupNorm(8, .))
    Ho = H // 2                 # `height` given to Conv is the post-pool height

    params = make_down_params(jax.random.PRNGKey(1), C, O, Ho)
    x = jax.random.normal(jax.random.PRNGKey(0), (B, C, H, W), jnp.float32)

    out = down_forward(x, params)
    jax.block_until_ready(out)

    ref = down_reference(x, params)
    np.testing.assert_allclose(np.asarray(out), np.asarray(ref), rtol=5e-4, atol=5e-4)

    print("KERNEL_OK")
</pallas_src>

<mosaic_0001>
module attributes {stable_mosaic.version = 11 : i64} {
  func.func @kernel(%arg0: i32, %arg1: memref<1x4x8x128xf32, #tpu.memory_space<vmem>>, %arg2: memref<128x128xf32, #tpu.memory_space<vmem>>, %arg3: memref<8x128xf32, #tpu.memory_space<vmem>>, %arg4: memref<9x128xf32, #tpu.memory_space<vmem>>, %arg5: memref<128x8xf32, #tpu.memory_space<vmem>>, %arg6: memref<8x128xf32, #tpu.memory_space<vmem>>, %arg7: memref<1x128xf32, #tpu.memory_space<vmem>>, %arg8: memref<1x128xf32, #tpu.memory_space<vmem>>, %arg9: memref<1x8x128xf32, #tpu.memory_space<vmem>>) attributes {dimension_semantics = [#tpu.dimension_semantics<parallel>], iteration_bounds = array<i64: 2>, scalar_prefetch = 0 : i64, scratch_operands = 0 : i64, tpu.core_type = #tpu.core_type<tc>, window_params = [{transform_indices = @transform_0, window_bounds = array<i64: 1, 4, 8, 128>}, {pipeline_mode = #tpu.pipeline_mode<synchronous>, transform_indices = @transform_1, window_bounds = array<i64: 128, 128>}, {pipeline_mode = #tpu.pipeline_mode<synchronous>, transform_indices = @transform_2, window_bounds = array<i64: 8, 128>}, {pipeline_mode = #tpu.pipeline_mode<synchronous>, transform_indices = @transform_3, window_bounds = array<i64: 9, 128>}, {pipeline_mode = #tpu.pipeline_mode<synchronous>, transform_indices = @transform_4, window_bounds = array<i64: 128, 8>}, {pipeline_mode = #tpu.pipeline_mode<synchronous>, transform_indices = @transform_5, window_bounds = array<i64: 8, 128>}, {pipeline_mode = #tpu.pipeline_mode<synchronous>, transform_indices = @transform_6, window_bounds = array<i64: 1, 128>}, {pipeline_mode = #tpu.pipeline_mode<synchronous>, transform_indices = @transform_7, window_bounds = array<i64: 1, 128>}, {transform_indices = @transform_8, window_bounds = array<i64: 1, 8, 128>}]} {
    %0 = tpu.iota {dimensions = array<i32: 0>} : vector<8x128xi32>
    %1 = tpu.iota {dimensions = array<i32: 1>} : vector<8x128xi32>
    %2 = tpu.iota {dimensions = array<i32: 0>} : vector<8x128xi32>
    %3 = tpu.iota {dimensions = array<i32: 1>} : vector<8x128xi32>
    %c0 = arith.constant 0 : index
    %c0_0 = arith.constant 0 : index
    %c0_1 = arith.constant 0 : index
    %c0_2 = arith.constant 0 : index
    %4 = vector.load %arg1[%c0, %c0_0, %c0_1, %c0_2] : memref<1x4x8x128xf32, #tpu.memory_space<vmem>>, vector<1x1x8x128xf32>
    %5 = vector.shape_cast %4 : vector<1x1x8x128xf32> to vector<8x128xf32>
    %c0_3 = arith.constant 0 : index
    %c1 = arith.constant 1 : index
    %c0_4 = arith.constant 0 : index
    %c0_5 = arith.constant 0 : index
    %6 = vector.load %arg1[%c0_3, %c1, %c0_4, %c0_5] : memref<1x4x8x128xf32, #tpu.memory_space<vmem>>, vector<1x1x8x128xf32>
    %7 = vector.shape_cast %6 : vector<1x1x8x128xf32> to vector<8x128xf32>
    %c0_6 = arith.constant 0 : index
    %c2 = arith.constant 2 : index
    %c0_7 = arith.constant 0 : index
    %c0_8 = arith.constant 0 : index
    %8 = vector.load %arg1[%c0_6, %c2, %c0_7, %c0_8] : memref<1x4x8x128xf32, #tpu.memory_space<vmem>>, vector<1x1x8x128xf32>
    %9 = vector.shape_cast %8 : vector<1x1x8x128xf32> to vector<8x128xf32>
    %c0_9 = arith.constant 0 : index
    %c3 = arith.constant 3 : index
    %c0_10 = arith.constant 0 : index
    %c0_11 = arith.constant 0 : index
    %10 = vector.load %arg1[%c0_9, %c3, %c0_10, %c0_11] : memref<1x4x8x128xf32, #tpu.memory_space<vmem>>, vector<1x1x8x128xf32>
    %11 = vector.shape_cast %10 : vector<1x1x8x128xf32> to vector<8x128xf32>
    %c4_i32 = arith.constant 4 : i32
    %12 = vector.broadcast %c4_i32 : i32 to vector<8x128xi32>
    %13 = arith.cmpi slt, %1, %12 : vector<8x128xi32>
    %c4_i32_12 = arith.constant 4 : i32
    %14 = tpu.dynamic_rotate %7 by %c4_i32_12 dim 1 : vector<8x128xf32>, i32 -> vector<8x128xf32>
    %cst = arith.constant 0xFF800000 : f32
    %15 = vector.broadcast %cst : f32 to vector<8x128xf32>
    %16 = arith.select %13, %15, %14 : vector<8x128xi1>, vector<8x128xf32>
    %c4_i32_13 = arith.constant 4 : i32
    %17 = vector.broadcast %c4_i32_13 : i32 to vector<8x128xi32>
    %18 = arith.cmpi slt, %1, %17 : vector<8x128xi32>
    %c4_i32_14 = arith.constant 4 : i32
    %19 = tpu.dynamic_rotate %11 by %c4_i32_14 dim 1 : vector<8x128xf32>, i32 -> vector<8x128xf32>
    %cst_15 = arith.constant 0xFF800000 : f32
    %20 = vector.broadcast %cst_15 : f32 to vector<8x128xf32>
    %21 = arith.select %18, %20, %19 : vector<8x128xi1>, vector<8x128xf32>
    %22 = arith.maximumf %5, %7 : vector<8x128xf32>
    %23 = arith.maximumf %22, %16 : vector<8x128xf32>
    %24 = arith.maximumf %23, %9 : vector<8x128xf32>
    %25 = arith.maximumf %24, %11 : vector<8x128xf32>
    %26 = arith.maximumf %25, %21 : vector<8x128xf32>
    %c0_i32 = arith.constant 0 : i32
    %27 = vector.broadcast %c0_i32 : i32 to vector<8x128xi32>
    %28 = arith.cmpi eq, %0, %27 : vector<8x128xi32>
    %c1_i32 = arith.constant 1 : i32
    %29 = tpu.dynamic_rotate %9 by %c1_i32 dim 0 : vector<8x128xf32>, i32 -> vector<8x128xf32>
    %cst_16 = arith.constant 0xFF800000 : f32
    %30 = vector.broadcast %cst_16 : f32 to vector<8x128xf32>
    %31 = arith.select %28, %30, %29 : vector<8x128xi1>, vector<8x128xf32>
    %32 = arith.maximumf %26, %31 : vector<8x128xf32>
    %c0_i32_17 = arith.constant 0 : i32
    %33 = vector.broadcast %c0_i32_17 : i32 to vector<8x128xi32>
    %34 = arith.cmpi eq, %0, %33 : vector<8x128xi32>
    %c1_i32_18 = arith.constant 1 : i32
    %35 = tpu.dynamic_rotate %11 by %c1_i32_18 dim 0 : vector<8x128xf32>, i32 -> vector<8x128xf32>
    %cst_19 = arith.constant 0xFF800000 : f32
    %36 = vector.broadcast %cst_19 : f32 to vector<8x128xf32>
    %37 = arith.select %34, %36, %35 : vector<8x128xi1>, vector<8x128xf32>
    %38 = arith.maximumf %32, %37 : vector<8x128xf32>
    %c0_i32_20 = arith.constant 0 : i32
    %39 = vector.broadcast %c0_i32_20 : i32 to vector<8x128xi32>
    %40 = arith.cmpi eq, %0, %39 : vector<8x128xi32>
    %c1_i32_21 = arith.constant 1 : i32
    %41 = tpu.dynamic_rotate %21 by %c1_i32_21 dim 0 : vector<8x128xf32>, i32 -> vector<8x128xf32>
    %cst_22 = arith.constant 0xFF800000 : f32
    %42 = vector.broadcast %cst_22 : f32 to vector<8x128xf32>
    %43 = arith.select %40, %42, %41 : vector<8x128xi1>, vector<8x128xf32>
    %44 = arith.maximumf %38, %43 : vector<8x128xf32>
    %c0_23 = arith.constant 0 : index
    %c0_24 = arith.constant 0 : index
    %45 = vector.load %arg2[%c0_23, %c0_24] : memref<128x128xf32, #tpu.memory_space<vmem>>, vector<128x128xf32>
    %cst_25 = arith.constant dense<0.000000e+00> : vector<8x128xf32>
    %46 = tpu.matmul %44, %45, %cst_25 {dimension_numbers = #tpu.dot_dimension_numbers<[1], [0], [0], [1], [0, 0, 1, 1], [], []>} : vector<8x128xf32>, vector<128x128xf32>, vector<8x128xf32> -> vector<8x128xf32>
    %c0_26 = arith.constant 0 : index
    %c0_27 = arith.constant 0 : index
    %47 = vector.load %arg3[%c0_26, %c0_27] : memref<8x128xf32, #tpu.memory_space<vmem>>, vector<8x128xf32>
    %48 = arith.addf %46, %47 : vector<8x128xf32>
    %c8_i32 = arith.constant 8 : i32
    %49 = vector.broadcast %c8_i32 : i32 to vector<8x128xi32>
    %50 = arith.cmpi slt, %3, %49 : vector<8x128xi32>
    %c8_i32_28 = arith.constant 8 : i32
    %51 = tpu.dynamic_rotate %48 by %c8_i32_28 dim 1 : vector<8x128xf32>, i32 -> vector<8x128xf32>
    %52 = arith.select %50, %48, %51 : vector<8x128xi1>, vector<8x128xf32>
    %c56_i32 = arith.constant 56 : i32
    %53 = vector.broadcast %c56_i32 : i32 to vector<8x128xi32>
    %54 = arith.cmpi sge, %3, %53 : vector<8x128xi32>
    %c120_i32 = arith.constant 120 : i32
    %55 = tpu.dynamic_rotate %48 by %c120_i32 dim 1 : vector<8x128xf32>, i32 -> vector<8x128xf32>
    %56 = arith.select %54, %48, %55 : vector<8x128xi1>, vector<8x128xf32>
    %cst_29 = arith.constant 0.000000e+00 : f32
    %57 = vector.broadcast %cst_29 : f32 to vector<8x128xf32>
    %c0_i32_30 = arith.constant 0 : i32
    %58 = vector.broadcast %c0_i32_30 : i32 to vector<8x128xi32>
    %59 = arith.cmpi eq, %2, %58 : vector<8x128xi32>
    %c1_i32_31 = arith.constant 1 : i32
    %60 = tpu.dynamic_rotate %52 by %c1_i32_31 dim 0 : vector<8x128xf32>, i32 -> vector<8x128xf32>
    %61 = arith.select %59, %52, %60 : vector<8x128xi1>, vector<8x128xf32>
    %c0_32 = arith.constant 0 : index
    %c0_33 = arith.constant 0 : index
    %62 = vector.load %arg4[%c0_32, %c0_33] : memref<9x128xf32, #tpu.memory_space<vmem>>, vector<1x128xf32>
    %63 = vector.broadcast %62 : vector<1x128xf32> to vector<8x128xf32>
    %64 = arith.mulf %63, %61 : vector<8x128xf32>
    %65 = arith.addf %57, %64 : vector<8x128xf32>
    %c0_i32_34 = arith.constant 0 : i32
    %66 = vector.broadcast %c0_i32_34 : i32 to vector<8x128xi32>
    %67 = arith.cmpi eq, %2, %66 : vector<8x128xi32>
    %c1_i32_35 = arith.constant 1 : i32
    %68 = tpu.dynamic_rotate %48 by %c1_i32_35 dim 0 : vector<8x128xf32>, i32 -> vector<8x128xf32>
    %69 = arith.select %67, %48, %68 : vector<8x128xi1>, vector<8x128xf32>
    %c1_36 = arith.constant 1 : index
    %c0_37 = arith.constant 0 : index
    %70 = vector.load %arg4[%c1_36, %c0_37] : memref<9x128xf32, #tpu.memory_space<vmem>>, vector<1x128xf32>
    %71 = vector.broadcast %70 : vector<1x128xf32> to vector<8x128xf32>
    %72 = arith.mulf %71, %69 : vector<8x128xf32>
    %73 = arith.addf %65, %72 : vector<8x128xf32>
    %c0_i32_38 = arith.constant 0 : i32
    %74 = vector.broadcast %c0_i32_38 : i32 to vector<8x128xi32>
    %75 = arith.cmpi eq, %2, %74 : vector<8x128xi32>
    %c1_i32_39 = arith.constant 1 : i32
    %76 = tpu.dynamic_rotate %56 by %c1_i32_39 dim 0 : vector<8x128xf32>, i32 -> vector<8x128xf32>
    %77 = arith.select %75, %56, %76 : vector<8x128xi1>, vector<8x128xf32>
    %c2_40 = arith.constant 2 : index
    %c0_41 = arith.constant 0 : index
    %78 = vector.load %arg4[%c2_40, %c0_41] : memref<9x128xf32, #tpu.memory_space<vmem>>, vector<1x128xf32>
    %79 = vector.broadcast %78 : vector<1x128xf32> to vector<8x128xf32>
    %80 = arith.mulf %79, %77 : vector<8x128xf32>
    %81 = arith.addf %73, %80 : vector<8x128xf32>
    %c3_42 = arith.constant 3 : index
    %c0_43 = arith.constant 0 : index
    %82 = vector.load %arg4[%c3_42, %c0_43] : memref<9x128xf32, #tpu.memory_space<vmem>>, vector<1x128xf32>
    %83 = vector.broadcast %82 : vector<1x128xf32> to vector<8x128xf32>
    %84 = arith.mulf %83, %52 : vector<8x128xf32>
    %85 = arith.addf %81, %84 : vector<8x128xf32>
    %c4 = arith.constant 4 : index
    %c0_44 = arith.constant 0 : index
    %86 = vector.load %arg4[%c4, %c0_44] : memref<9x128xf32, #tpu.memory_space<vmem>>, vector<1x128xf32>
    %87 = vector.broadcast %86 : vector<1x128xf32> to vector<8x128xf32>
    %88 = arith.mulf %87, %48 : vector<8x128xf32>
    %89 = arith.addf %85, %88 : vector<8x128xf32>
    %c5 = arith.constant 5 : index
    %c0_45 = arith.constant 0 : index
    %90 = vector.load %arg4[%c5, %c0_45] : memref<9x128xf32, #tpu.memory_space<vmem>>, vector<1x128xf32>
    %91 = vector.broadcast %90 : vector<1x128xf32> to vector<8x128xf32>
    %92 = arith.mulf %91, %56 : vector<8x128xf32>
    %93 = arith.addf %89, %92 : vector<8x128xf32>
    %c7_i32 = arith.constant 7 : i32
    %94 = vector.broadcast %c7_i32 : i32 to vector<8x128xi32>
    %95 = arith.cmpi eq, %2, %94 : vector<8x128xi32>
    %c7_i32_46 = arith.constant 7 : i32
    %96 = tpu.dynamic_rotate %52 by %c7_i32_46 dim 0 : vector<8x128xf32>, i32 -> vector<8x128xf32>
    %97 = arith.select %95, %52, %96 : vector<8x128xi1>, vector<8x128xf32>
    %c6 = arith.constant 6 : index
    %c0_47 = arith.constant 0 : index
    %98 = vector.load %arg4[%c6, %c0_47] : memref<9x128xf32, #tpu.memory_space<vmem>>, vector<1x128xf32>
    %99 = vector.broadcast %98 : vector<1x128xf32> to vector<8x128xf32>
    %100 = arith.mulf %99, %97 : vector<8x128xf32>
    %101 = arith.addf %93, %100 : vector<8x128xf32>
    %c7_i32_48 = arith.constant 7 : i32
    %102 = vector.broadcast %c7_i32_48 : i32 to vector<8x128xi32>
    %103 = arith.cmpi eq, %2, %102 : vector<8x128xi32>
    %c7_i32_49 = arith.constant 7 : i32
    %104 = tpu.dynamic_rotate %48 by %c7_i32_49 dim 0 : vector<8x128xf32>, i32 -> vector<8x128xf32>
    %105 = arith.select %103, %48, %104 : vector<8x128xi1>, vector<8x128xf32>
    %c7 = arith.constant 7 : index
    %c0_50 = arith.constant 0 : index
    %106 = vector.load %arg4[%c7, %c0_50] : memref<9x128xf32, #tpu.memory_space<vmem>>, vector<1x128xf32>
    %107 = vector.broadcast %106 : vector<1x128xf32> to vector<8x128xf32>
    %108 = arith.mulf %107, %105 : vector<8x128xf32>
    %109 = arith.addf %101, %108 : vector<8x128xf32>
    %c7_i32_51 = arith.constant 7 : i32
    %110 = vector.broadcast %c7_i32_51 : i32 to vector<8x128xi32>
    %111 = arith.cmpi eq, %2, %110 : vector<8x128xi32>
    %c7_i32_52 = arith.constant 7 : i32
    %112 = tpu.dynamic_rotate %56 by %c7_i32_52 dim 0 : vector<8x128xf32>, i32 -> vector<8x128xf32>
    %113 = arith.select %111, %56, %112 : vector<8x128xi1>, vector<8x128xf32>
    %c8 = arith.constant 8 : index
    %c0_53 = arith.constant 0 : index
    %114 = vector.load %arg4[%c8, %c0_53] : memref<9x128xf32, #tpu.memory_space<vmem>>, vector<1x128xf32>
    %115 = vector.broadcast %114 : vector<1x128xf32> to vector<8x128xf32>
    %116 = arith.mulf %115, %113 : vector<8x128xf32>
    %117 = arith.addf %109, %116 : vector<8x128xf32>
    %cst_54 = arith.constant dense<0.000000e+00> : vector<128xf32>
    %118 = vector.multi_reduction <add>, %117, %cst_54 [0] : vector<8x128xf32> to vector<128xf32>
    %119 = vector.shape_cast %118 : vector<128xf32> to vector<1x128xf32>
    %120 = arith.mulf %117, %117 : vector<8x128xf32>
    %cst_55 = arith.constant dense<0.000000e+00> : vector<128xf32>
    %121 = vector.multi_reduction <add>, %120, %cst_55 [0] : vector<8x128xf32> to vector<128xf32>
    %122 = vector.shape_cast %121 : vector<128xf32> to vector<1x128xf32>
    %c0_56 = arith.constant 0 : index
    %c0_57 = arith.constant 0 : index
    %123 = vector.load %arg5[%c0_56, %c0_57] : memref<128x8xf32, #tpu.memory_space<vmem>>, vector<128x8xf32>
    %cst_58 = arith.constant dense<0.000000e+00> : vector<1x8xf32>
    %124 = tpu.matmul %119, %123, %cst_58 {dimension_numbers = #tpu.dot_dimension_numbers<[1], [0], [0], [1], [0, 0, 1, 1], [], []>} : vector<1x128xf32>, vector<128x8xf32>, vector<1x8xf32> -> vector<1x8xf32>
    %c0_59 = arith.constant 0 : index
    %c0_60 = arith.constant 0 : index
    %125 = vector.load %arg5[%c0_59, %c0_60] : memref<128x8xf32, #tpu.memory_space<vmem>>, vector<128x8xf32>
    %cst_61 = arith.constant dense<0.000000e+00> : vector<1x8xf32>
    %126 = tpu.matmul %122, %125, %cst_61 {dimension_numbers = #tpu.dot_dimension_numbers<[1], [0], [0], [1], [0, 0, 1, 1], [], []>} : vector<1x128xf32>, vector<128x8xf32>, vector<1x8xf32> -> vector<1x8xf32>
    %cst_62 = arith.constant 1.562500e-02 : f32
    %127 = vector.broadcast %cst_62 : f32 to vector<1x8xf32>
    %128 = arith.mulf %124, %127 : vector<1x8xf32>
    %cst_63 = arith.constant 1.562500e-02 : f32
    %129 = vector.broadcast %cst_63 : f32 to vector<1x8xf32>
    %130 = arith.mulf %126, %129 : vector<1x8xf32>
    %131 = arith.mulf %128, %128 : vector<1x8xf32>
    %132 = arith.subf %130, %131 : vector<1x8xf32>
    %cst_64 = arith.constant 9.99999974E-6 : f32
    %133 = vector.broadcast %cst_64 : f32 to vector<1x8xf32>
    %134 = arith.addf %132, %133 : vector<1x8xf32>
    %135 = math.rsqrt %134 : vector<1x8xf32>
    %c0_65 = arith.constant 0 : index
    %c0_66 = arith.constant 0 : index
    %136 = vector.load %arg6[%c0_65, %c0_66] : memref<8x128xf32, #tpu.memory_space<vmem>>, vector<8x128xf32>
    %cst_67 = arith.constant dense<0.000000e+00> : vector<1x128xf32>
    %137 = tpu.matmul %128, %136, %cst_67 {dimension_numbers = #tpu.dot_dimension_numbers<[1], [0], [0], [1], [0, 0, 1, 1], [], []>} : vector<1x8xf32>, vector<8x128xf32>, vector<1x128xf32> -> vector<1x128xf32>
    %c0_68 = arith.constant 0 : index
    %c0_69 = arith.constant 0 : index
    %138 = vector.load %arg6[%c0_68, %c0_69] : memref<8x128xf32, #tpu.memory_space<vmem>>, vector<8x128xf32>
    %cst_70 = arith.constant dense<0.000000e+00> : vector<1x128xf32>
    %139 = tpu.matmul %135, %138, %cst_70 {dimension_numbers = #tpu.dot_dimension_numbers<[1], [0], [0], [1], [0, 0, 1, 1], [], []>} : vector<1x8xf32>, vector<8x128xf32>, vector<1x128xf32> -> vector<1x128xf32>
    %c0_71 = arith.constant 0 : index
    %c0_72 = arith.constant 0 : index
    %140 = vector.load %arg7[%c0_71, %c0_72] : memref<1x128xf32, #tpu.memory_space<vmem>>, vector<1x128xf32>
    %141 = arith.mulf %139, %140 : vector<1x128xf32>
    %c0_73 = arith.constant 0 : index
    %c0_74 = arith.constant 0 : index
    %142 = vector.load %arg8[%c0_73, %c0_74] : memref<1x128xf32, #tpu.memory_space<vmem>>, vector<1x128xf32>
    %143 = arith.mulf %137, %141 : vector<1x128xf32>
    %144 = arith.subf %142, %143 : vector<1x128xf32>
    %145 = vector.broadcast %141 : vector<1x128xf32> to vector<8x128xf32>
    %146 = arith.mulf %117, %145 : vector<8x128xf32>
    %147 = vector.broadcast %144 : vector<1x128xf32> to vector<8x128xf32>
    %148 = arith.addf %146, %147 : vector<8x128xf32>
    %cst_75 = arith.constant 5.000000e-01 : f32
    %149 = vector.broadcast %cst_75 : f32 to vector<8x128xf32>
    %150 = arith.mulf %149, %148 : vector<8x128xf32>
    %cst_76 = arith.constant 0.707106769 : f32
    %151 = vector.broadcast %cst_76 : f32 to vector<8x128xf32>
    %152 = arith.mulf %148, %151 : vector<8x128xf32>
    %153 = math.absf %152 : vector<8x128xf32>
    %cst_77 = arith.constant 0.327591091 : f32
    %154 = vector.broadcast %cst_77 : f32 to vector<8x128xf32>
    %155 = arith.mulf %154, %153 : vector<8x128xf32>
    %cst_78 = arith.constant 1.000000e+00 : f32
    %156 = vector.broadcast %cst_78 : f32 to vector<8x128xf32>
    %157 = arith.addf %156, %155 : vector<8x128xf32>
    %cst_79 = arith.constant 1.000000e+00 : f32
    %158 = vector.broadcast %cst_79 : f32 to vector<8x128xf32>
    %159 = arith.divf %158, %157 : vector<8x128xf32>
    %cst_80 = arith.constant 1.06140542 : f32
    %160 = vector.broadcast %cst_80 : f32 to vector<8x128xf32>
    %161 = arith.mulf %160, %159 : vector<8x128xf32>
    %cst_81 = arith.constant -1.45315206 : f32
    %162 = vector.broadcast %cst_81 : f32 to vector<8x128xf32>
    %163 = arith.addf %161, %162 : vector<8x128xf32>
    %164 = arith.mulf %163, %159 : vector<8x128xf32>
    %cst_82 = arith.constant 1.42141378 : f32
    %165 = vector.broadcast %cst_82 : f32 to vector<8x128xf32>
    %166 = arith.addf %164, %165 : vector<8x128xf32>
    %167 = arith.mulf %166, %159 : vector<8x128xf32>
    %cst_83 = arith.constant -0.284496725 : f32
    %168 = vector.broadcast %cst_83 : f32 to vector<8x128xf32>
    %169 = arith.addf %167, %168 : vector<8x128xf32>
    %170 = arith.mulf %169, %159 : vector<8x128xf32>
    %cst_84 = arith.constant 0.254829586 : f32
    %171 = vector.broadcast %cst_84 : f32 to vector<8x128xf32>
    %172 = arith.addf %170, %171 : vector<8x128xf32>
    %173 = arith.mulf %172, %159 : vector<8x128xf32>
    %cst_85 = arith.constant 0.000000e+00 : f32
    %174 = vector.broadcast %cst_85 : f32 to vector<8x128xf32>
    %175 = arith.subf %174, %153 : vector<8x128xf32>
    %176 = arith.mulf %175, %153 : vector<8x128xf32>
    %177 = math.exp %176 : vector<8x128xf32>
    %178 = arith.mulf %173, %177 : vector<8x128xf32>
    %cst_86 = arith.constant 1.000000e+00 : f32
    %179 = vector.broadcast %cst_86 : f32 to vector<8x128xf32>
    %180 = arith.subf %179, %178 : vector<8x128xf32>
    %cst_87 = arith.constant 0.000000e+00 : f32
    %181 = vector.broadcast %cst_87 : f32 to vector<8x128xf32>
    %182 = arith.cmpf oge, %152, %181 : vector<8x128xf32>
    %cst_88 = arith.constant 0.000000e+00 : f32
    %183 = vector.broadcast %cst_88 : f32 to vector<8x128xf32>
    %184 = arith.subf %183, %180 : vector<8x128xf32>
    %185 = arith.select %182, %180, %184 : vector<8x128xi1>, vector<8x128xf32>
    %cst_89 = arith.constant 1.000000e+00 : f32
    %186 = vector.broadcast %cst_89 : f32 to vector<8x128xf32>
    %187 = arith.addf %186, %185 : vector<8x128xf32>
    %188 = arith.mulf %150, %187 : vector<8x128xf32>
    %c0_90 = arith.constant 0 : index
    %c0_91 = arith.constant 0 : index
    %c0_92 = arith.constant 0 : index
    %189 = vector.load %arg9[%c0_90, %c0_91, %c0_92] : memref<1x8x128xf32, #tpu.memory_space<vmem>>, vector<1x8x128xf32>
    %190 = vector.shape_cast %189 : vector<1x8x128xf32> to vector<8x128xf32>
    %191 = vector.shape_cast %188 : vector<8x128xf32> to vector<1x8x128xf32>
    tpu.vector_store %arg9[%c0_90, %c0_91, %c0_92], %191 {strides = array<i32>} : memref<1x8x128xf32, #tpu.memory_space<vmem>>, vector<1x8x128xf32>,
    return
  }
  func.func @transform_0(%arg0: i32) -> (i32, i32, i32, i32) {
    %c0_i32 = arith.constant 0 : i32
    %c0_i32_0 = arith.constant 0 : i32
    %c0_i32_1 = arith.constant 0 : i32
    %c0_i32_2 = arith.constant 0 : i32
    return %arg0, %c0_i32, %c0_i32_0, %c0_i32_1 : i32, i32, i32, i32
  }
  func.func @transform_1(%arg0: i32) -> (i32, i32) {
    %c0_i32 = arith.constant 0 : i32
    %c0_i32_0 = arith.constant 0 : i32
    %c0_i32_1 = arith.constant 0 : i32
    return %c0_i32, %c0_i32_0 : i32, i32
  }
  func.func @transform_2(%arg0: i32) -> (i32, i32) {
    %c0_i32 = arith.constant 0 : i32
    %c0_i32_0 = arith.constant 0 : i32
    %c0_i32_1 = arith.constant 0 : i32
    return %c0_i32, %c0_i32_0 : i32, i32
  }
  func.func @transform_3(%arg0: i32) -> (i32, i32) {
    %c0_i32 = arith.constant 0 : i32
    %c0_i32_0 = arith.constant 0 : i32
    %c0_i32_1 = arith.constant 0 : i32
    return %c0_i32, %c0_i32_0 : i32, i32
  }
  func.func @transform_4(%arg0: i32) -> (i32, i32) {
    %c0_i32 = arith.constant 0 : i32
    %c0_i32_0 = arith.constant 0 : i32
    %c0_i32_1 = arith.constant 0 : i32
    return %c0_i32, %c0_i32_0 : i32, i32
  }
  func.func @transform_5(%arg0: i32) -> (i32, i32) {
    %c0_i32 = arith.constant 0 : i32
    %c0_i32_0 = arith.constant 0 : i32
    %c0_i32_1 = arith.constant 0 : i32
    return %c0_i32, %c0_i32_0 : i32, i32
  }
  func.func @transform_6(%arg0: i32) -> (i32, i32) {
    %c0_i32 = arith.constant 0 : i32
    %c0_i32_0 = arith.constant 0 : i32
    %c0_i32_1 = arith.constant 0 : i32
    return %c0_i32, %c0_i32_0 : i32, i32
  }
  func.func @transform_7(%arg0: i32) -> (i32, i32) {
    %c0_i32 = arith.constant 0 : i32
    %c0_i32_0 = arith.constant 0 : i32
    %c0_i32_1 = arith.constant 0 : i32
    return %c0_i32, %c0_i32_0 : i32, i32
  }
  func.func @transform_8(%arg0: i32) -> (i32, i32, i32) {
    %c0_i32 = arith.constant 0 : i32
    %c0_i32_0 = arith.constant 0 : i32
    %c0_i32_1 = arith.constant 0 : i32
    return %arg0, %c0_i32, %c0_i32_0 : i32, i32, i32
  }
}

</mosaic_0001>

<llo_original>
// kernel: tpu_custom_call.1
$region0: #{tpu_custom_call.1}
  #allocation0 [shape = 'u32[]', space=smem, size = 0x4, offset = 0x4, fixed_abs, tag = 'smem constant byte address 0x4 - core index']
  #allocation1 [shape = 'u32[72,128]{1,0:T(1,128)}', space=vmem, size = 0x9000, scoped, tag = 'internal scratch']
  %s0 = inlined_call_operand.hbm [shape: f32[2,4,8,128], index: 0, kind: input, shape index: {}]
  %s1 = inlined_call_operand.vmem [shape: f32[128,128], index: 1, kind: input, shape index: {}]
  %s2 = inlined_call_operand.vmem [shape: f32[8,128], index: 2, kind: input, shape index: {}]
  %s3 = inlined_call_operand.hbm [shape: f32[9,128], index: 3, kind: input, shape index: {}]
  %s4 = inlined_call_operand.vmem [shape: f32[128,8], index: 4, kind: input, shape index: {}]
  %s5 = inlined_call_operand.hbm [shape: f32[8,128], index: 5, kind: input, shape index: {}]
  %s6 = inlined_call_operand.vmem [shape: f32[1,128], index: 6, kind: input, shape index: {}]
  %s7 = inlined_call_operand.vmem [shape: f32[1,128], index: 7, kind: input, shape index: {}]
  %s8 = inlined_call_operand.hbm [shape: f32[2,8,128], index: 8, kind: output, shape index: {}]
  %s9 = sld [smem:[#allocation0]]
  $region77: #{tpu_custom_call.1} parent=0
    _
  %s11 = ssub.s32 1, %s9
  %s12 = scalar_select 0, %s11, %s9
  $region1: #{tpu_custom_call.1} parent=0
    #allocation2 [shape = 'u8[32768]{0}', space=vmem, size = 0x8000, scoped, tag = 'input window, operand 0']
    #allocation3 [shape = 's32[2]{0}', space=sflag, size = 0x8, scoped, tag = 'scoped memory for tpu_custom_call.1']
    #allocation4 [shape = 's32[2]{0}', space=sflag, size = 0x8, scoped, tag = 'scoped memory for tpu_custom_call.1']
    #allocation5 [shape = 'u8[8192]{0}', space=vmem, size = 0x2000, scoped, tag = 'input window, operand 3, single buffered']
    #allocation6 [shape = 's32[1]{0}', space=sflag, size = 0x4, scoped, tag = 'scoped memory for tpu_custom_call.1']
    #allocation7 [shape = 'u8[4096]{0}', space=vmem, size = 0x1000, scoped, tag = 'input window, operand 5, single buffered']
    #allocation8 [shape = 'u8[8192]{0}', space=vmem, size = 0x2000, scoped, tag = 'output window, operand 0']
    %13 = vsyncpa [#allocation3], 0
    %s14 = scalar_lea.sflag [#allocation3], 1
    %15 = vsyncpa %s14, 0
    %16 = vsyncpa [#allocation6], 0
    %17 = vsyncpa [#allocation4], 0
    %s18 = scalar_lea.sflag [#allocation4], 1
    %19 = vsyncpa %s18, 0
    loop: start=0, step=1, limit=4
    $region2: #{tpu_custom_call.1} parent=1 // loop_pre_header
      _
    $region3: #{tpu_custom_call.1} parent=1 // loop_header
      %s21 = sphi 0, %s25
      %p22 = scmp.ge.s32.totalorder %s21, 4
      %s31 = sphi 0, %s33
      %s34 = sphi 0, %s31
      %s35 = sphi 0, %s34
      %s51 = sphi 0, %s35
      %s55 = sphi 0, %s55
      %s57 = sphi 0, %s55
      %s58 = sphi 0, %s57
      %s72 = sphi 0, %s58
      %s76 = sphi 0, %s76
      %s78 = sphi 0, %s76
      %s79 = sphi 0, %s78
      %s93 = sphi 0, %s79
      %s97 = sphi 0, %s97
      %s99 = sphi 0, %s97
      %s100 = sphi 0, %s99
      %s114 = sphi 0, %s100
      %s118 = sphi 0, %s118
      %s120 = sphi 0, %s118
      %s121 = sphi 0, %s120
      %s135 = sphi 0, %s121
      %s139 = sphi 0, %s139
      %s141 = sphi 0, %s139
      %s142 = sphi 0, %s141
      %s156 = sphi 0, %s142
      %s160 = sphi 0, %s160
      %s162 = sphi 0, %s160
      %s163 = sphi 0, %s162
      %s177 = sphi 0, %s163
      %s181 = sphi 0, %s181
      %s183 = sphi 0, %s181
      %s184 = sphi 0, %s183
      %s198 = sphi 0, %s184
      %s204 = sphi 0, %s206
      %s207 = sphi 0, %s204
      %s208 = sphi 0, %s207
      %s224 = sphi 0, %s208
    $region4: #{tpu_custom_call.1} parent=1 // loop_header_branch
      %24 = sbr.rel (%p22) target = $region8
    $region5: #{tpu_custom_call.1} parent=1 // loop_body
      %s26 = ssub.s32 %s21, 1
      %s27 = ssub.s32 %s21, 2
      %s28 = sadd.s32 %s21, 1
      %s29 = ssub.s32 %s21, %s28
      %p30 = scmp.eq.s32.totalorder %s29, 0
      %s32 = sadd.s32 %s31, 1
      %s33 = scalar_select %p30, %s31, %s32
      %p36 = pneg %p30
      %p37 = scmp.eq.s32.totalorder %s21, 1
      %p38 = por %p36, %p37
      %p39 = scmp.ne.s32.totalorder %s31, %s34
      %p40 = scmp.eq.s32.totalorder %s21, 0
      %p41 = por %p39, %p40
      %p42 = scmp.ne.s32.totalorder %s31, %s34
      %p43 = scmp.eq.s32.totalorder %s26, 1
      %p44 = por %p42, %p43
      %p45 = scmp.ne.s32.totalorder %s34, %s35
      %p46 = scmp.eq.s32.totalorder %s26, 0
      %p47 = por %p45, %p46
      %p48 = scmp.ne.s32.totalorder %s34, %s35
      %p49 = scmp.eq.s32.totalorder %s27, 1
      %p50 = por %p48, %p49
      %p52 = scmp.ne.s32.totalorder %s35, %s51
      %p53 = scmp.eq.s32.totalorder %s27, 0
      %p54 = por %p52, %p53
      %s56 = sadd.s32 %s55, 1
      %p59 = scmp.eq.s32.totalorder %s21, 1
      %p60 = scmp.ne.s32.totalorder %s55, %s57
      %p61 = scmp.eq.s32.totalorder %s21, 0
      %p62 = por %p60, %p61
      %p63 = scmp.ne.s32.totalorder %s55, %s57
      %p64 = scmp.eq.s32.totalorder %s26, 1
      %p65 = por %p63, %p64
      %p66 = scmp.ne.s32.totalorder %s57, %s58
      %p67 = scmp.eq.s32.totalorder %s26, 0
      %p68 = por %p66, %p67
      %p69 = scmp.ne.s32.totalorder %s57, %s58
      %p70 = scmp.eq.s32.totalorder %s27, 1
      %p71 = por %p69, %p70
      %p73 = scmp.ne.s32.totalorder %s58, %s72
      %p74 = scmp.eq.s32.totalorder %s27, 0
      %p75 = por %p73, %p74
      %s77 = sadd.s32 %s76, 1
      %p80 = scmp.eq.s32.totalorder %s21, 1
      %p81 = scmp.ne.s32.totalorder %s76, %s78
      %p82 = scmp.eq.s32.totalorder %s21, 0
      %p83 = por %p81, %p82
      %p84 = scmp.ne.s32.totalorder %s76, %s78
      %p85 = scmp.eq.s32.totalorder %s26, 1
      %p86 = por %p84, %p85
      %p87 = scmp.ne.s32.totalorder %s78, %s79
      %p88 = scmp.eq.s32.totalorder %s26, 0
      %p89 = por %p87, %p88
      %p90 = scmp.ne.s32.totalorder %s78, %s79
      %p91 = scmp.eq.s32.totalorder %s27, 1
      %p92 = por %p90, %p91
      %p94 = scmp.ne.s32.totalorder %s79, %s93
      %p95 = scmp.eq.s32.totalorder %s27, 0
      %p96 = por %p94, %p95
      %s98 = sadd.s32 %s97, 1
      %p101 = scmp.eq.s32.totalorder %s21, 1
      %p102 = scmp.ne.s32.totalorder %s97, %s99
      %p103 = scmp.eq.s32.totalorder %s21, 0
      %p104 = por %p102, %p103
      %p105 = scmp.ne.s32.totalorder %s97, %s99
      %p106 = scmp.eq.s32.totalorder %s26, 1
      %p107 = por %p105, %p106
      %p108 = scmp.ne.s32.totalorder %s99, %s100
      %p109 = scmp.eq.s32.totalorder %s26, 0
      %p110 = por %p108, %p109
      %p111 = scmp.ne.s32.totalorder %s99, %s100
      %p112 = scmp.eq.s32.totalorder %s27, 1
      %p113 = por %p111, %p112
      %p115 = scmp.ne.s32.totalorder %s100, %s114
      %p116 = scmp.eq.s32.totalorder %s27, 0
      %p117 = por %p115, %p116
      %s119 = sadd.s32 %s118, 1
      %p122 = scmp.eq.s32.totalorder %s21, 1
      %p123 = scmp.ne.s32.totalorder %s118, %s120
      %p124 = scmp.eq.s32.totalorder %s21, 0
      %p125 = por %p123, %p124
      %p126 = scmp.ne.s32.totalorder %s118, %s120
      %p127 = scmp.eq.s32.totalorder %s26, 1
      %p128 = por %p126, %p127
      %p129 = scmp.ne.s32.totalorder %s120, %s121
      %p130 = scmp.eq.s32.totalorder %s26, 0
      %p131 = por %p129, %p130
      %p132 = scmp.ne.s32.totalorder %s120, %s121
      %p133 = scmp.eq.s32.totalorder %s27, 1
      %p134 = por %p132, %p133
      %p136 = scmp.ne.s32.totalorder %s121, %s135
      %p137 = scmp.eq.s32.totalorder %s27, 0
      %p138 = por %p136, %p137
      %s140 = sadd.s32 %s139, 1
      %p143 = scmp.eq.s32.totalorder %s21, 1
      %p144 = scmp.ne.s32.totalorder %s139, %s141
      %p145 = scmp.eq.s32.totalorder %s21, 0
      %p146 = por %p144, %p145
      %p147 = scmp.ne.s32.totalorder %s139, %s141
      %p148 = scmp.eq.s32.totalorder %s26, 1
      %p149 = por %p147, %p148
      %p150 = scmp.ne.s32.totalorder %s141, %s142
      %p151 = scmp.eq.s32.totalorder %s26, 0
      %p152 = por %p150, %p151
      %p153 = scmp.ne.s32.totalorder %s141, %s142
      %p154 = scmp.eq.s32.totalorder %s27, 1
      %p155 = por %p153, %p154
      %p157 = scmp.ne.s32.totalorder %s142, %s156
      %p158 = scmp.eq.s32.totalorder %s27, 0
      %p159 = por %p157, %p158
      %s161 = sadd.s32 %s160, 1
      %p164 = scmp.eq.s32.totalorder %s21, 1
      %p165 = scmp.ne.s32.totalorder %s160, %s162
      %p166 = scmp.eq.s32.totalorder %s21, 0
      %p167 = por %p165, %p166
      %p168 = scmp.ne.s32.totalorder %s160, %s162
      %p169 = scmp.eq.s32.totalorder %s26, 1
      %p170 = por %p168, %p169
      %p171 = scmp.ne.s32.totalorder %s162, %s163
      %p172 = scmp.eq.s32.totalorder %s26, 0
      %p173 = por %p171, %p172
      %p174 = scmp.ne.s32.totalorder %s162, %s163
      %p175 = scmp.eq.s32.totalorder %s27, 1
      %p176 = por %p174, %p175
      %p178 = scmp.ne.s32.totalorder %s163, %s177
      %p179 = scmp.eq.s32.totalorder %s27, 0
      %p180 = por %p178, %p179
      %s182 = sadd.s32 %s181, 1
      %p185 = scmp.eq.s32.totalorder %s21, 1
      %p186 = scmp.ne.s32.totalorder %s181, %s183
      %p187 = scmp.eq.s32.totalorder %s21, 0
      %p188 = por %p186, %p187
      %p189 = scmp.ne.s32.totalorder %s181, %s183
      %p190 = scmp.eq.s32.totalorder %s26, 1
      %p191 = por %p189, %p190
      %p192 = scmp.ne.s32.totalorder %s183, %s184
      %p193 = scmp.eq.s32.totalorder %s26, 0
      %p194 = por %p192, %p193
      %p195 = scmp.ne.s32.totalorder %s183, %s184
      %p196 = scmp.eq.s32.totalorder %s27, 1
      %p197 = por %p195, %p196
      %p199 = scmp.ne.s32.totalorder %s184, %s198
      %p200 = scmp.eq.s32.totalorder %s27, 0
      %p201 = por %p199, %p200
      %s202 = ssub.s32 %s21, %s28
      %p203 = scmp.eq.s32.totalorder %s202, 0
      %s205 = sadd.s32 %s204, 1
      %s206 = scalar_select %p203, %s204, %s205
      %p209 = pneg %p203
      %p210 = scmp.eq.s32.totalorder %s21, 1
      %p211 = por %p209, %p210
      %p212 = scmp.ne.s32.totalorder %s204, %s207
      %p213 = scmp.eq.s32.totalorder %s21, 0
      %p214 = por %p212, %p213
      %p215 = scmp.ne.s32.totalorder %s204, %s207
      %p216 = scmp.eq.s32.totalorder %s26, 1
      %p217 = por %p215, %p216
      %p218 = scmp.ne.s32.totalorder %s207, %s208
      %p219 = scmp.eq.s32.totalorder %s26, 0
      %p220 = por %p218, %p219
      %p221 = scmp.ne.s32.totalorder %s207, %s208
      %p222 = scmp.eq.s32.totalorder %s27, 1
      %p223 = por %p221, %p222
      %p225 = scmp.ne.s32.totalorder %s208, %s224
      %p226 = scmp.eq.s32.totalorder %s27, 0
      %p227 = por %p225, %p226
      %p228 = scmp.le.s32.totalorder 1, %s21
      %p229 = scmp.lt.s32.totalorder %s21, 3
      %p230 = pnand %p228, %p229
      %p231 = pneg %p230
      // Predicated region
      $region9: #{tpu_custom_call.1} parent=5 // pred_check
        _
      $region10: #{tpu_custom_call.1} parent=5 // pred_check_branch
        %233 = sbr.rel (%p230) target = $region12
      $region11: #{tpu_custom_call.1} parent=5 // pred_region
        %s234 = ssub.s32 %s21, 1
        // Predicated region
        $region13: #{tpu_custom_call.1} parent=11 // pred_check
          %p235 = pneg %p68
        $region14: #{tpu_custom_call.1} parent=11 // pred_check_branch
          %237 = sbr.rel (%p235) target = $region16
        $region15: #{tpu_custom_call.1} parent=11 // pred_region
          _
        $region16: #{tpu_custom_call.1} parent=11 // pred_fallthru
          _
        // Predicated region
        $region17: #{tpu_custom_call.1} parent=11 // pred_check
          %p238 = pneg %p89
        $region18: #{tpu_custom_call.1} parent=11 // pred_check_branch
          %240 = sbr.rel (%p238) target = $region20
        $region19: #{tpu_custom_call.1} parent=11 // pred_region
          _
        $region20: #{tpu_custom_call.1} parent=11 // pred_fallthru
          _
        // Predicated region
        $region21: #{tpu_custom_call.1} parent=11 // pred_check
          %p241 = pneg %p110
        $region22: #{tpu_custom_call.1} parent=11 // pred_check_branch
          %243 = sbr.rel (%p241) target = $region24
        $region23: #{tpu_custom_call.1} parent=11 // pred_region
          %245 = vsyncadd [#allocation6], 0
          %s246 = sshll.u32 %s3, 4
          %s247 = int_to_ptr.hbm [resolvable:$true] %s246
          %s248 = sshll.u32 [#allocation5], 4
          %s249 = int_to_ptr.vmem [resolvable:$true] %s248
          %254 = dma.hbm_to_vmem [thread:$0]  %s247, 256, %s249, [#allocation6], 128, 128, 8
        $region24: #{tpu_custom_call.1} parent=11 // pred_fallthru
          _
        // Predicated region
        $region25: #{tpu_custom_call.1} parent=11 // pred_check
          %p255 = pneg %p131
        $region26: #{tpu_custom_call.1} parent=11 // pred_check_branch
          %257 = sbr.rel (%p255) target = $region28
        $region27: #{tpu_custom_call.1} parent=11 // pred_region
          _
        $region28: #{tpu_custom_call.1} parent=11 // pred_fallthru
          _
        // Predicated region
        $region29: #{tpu_custom_call.1} parent=11 // pred_check
          %p258 = pneg %p152
        $region30: #{tpu_custom_call.1} parent=11 // pred_check_branch
          %260 = sbr.rel (%p258) target = $region32
        $region31: #{tpu_custom_call.1} parent=11 // pred_region
          %262 = vsyncadd [#allocation6], 0
          %s264 = sshll.u32 %s5, 4
          %s265 = int_to_ptr.hbm [resolvable:$true] %s264
          %s266 = sshll.u32 [#allocation7], 4
          %s267 = int_to_ptr.vmem [resolvable:$true] %s266
          %269 = dma.hbm_to_vmem [thread:$0]  %s265, 128, %s267, [#allocation6]
        $region32: #{tpu_custom_call.1} parent=11 // pred_fallthru
          _
        // Predicated region
        $region33: #{tpu_custom_call.1} parent=11 // pred_check
          %p270 = pneg %p173
        $region34: #{tpu_custom_call.1} parent=11 // pred_check_branch
          %272 = sbr.rel (%p270) target = $region36
        $region35: #{tpu_custom_call.1} parent=11 // pred_region
          _
        $region36: #{tpu_custom_call.1} parent=11 // pred_fallthru
          _
        // Predicated region
        $region37: #{tpu_custom_call.1} parent=11 // pred_check
          %p273 = pneg %p194
        $region38: #{tpu_custom_call.1} parent=11 // pred_check_branch
          %275 = sbr.rel (%p273) target = $region40
        $region39: #{tpu_custom_call.1} parent=11 // pred_region
          _
        $region40: #{tpu_custom_call.1} parent=11 // pred_fallthru
          _
      $region12: #{tpu_custom_call.1} parent=5 // pred_fallthru
        _
      %p276 = scmp.lt.s32.totalorder %s21, 2
      // Predicated region
      $region41: #{tpu_custom_call.1} parent=5 // pred_check
        %p277 = pneg %p276
      $region42: #{tpu_custom_call.1} parent=5 // pred_check_branch
        %279 = sbr.rel (%p277) target = $region44
      $region43: #{tpu_custom_call.1} parent=5 // pred_region
        // Predicated region
        $region45: #{tpu_custom_call.1} parent=43 // pred_check
          %p280 = pneg %p41
        $region46: #{tpu_custom_call.1} parent=43 // pred_check_branch
          %282 = sbr.rel (%p280) target = $region48
        $region47: #{tpu_custom_call.1} parent=43 // pred_region
          %s283 = sand.u32 %s31, 1
          %s284 = scalar_lea.sflag [#allocation3], %s283
          %s285 = sand.u32 %s31, 1
          %s286 = smul.addr %s285, 32
          %s287 = scalar_lea.vmem [#allocation2], %s286
          %289 = vsyncadd %s284, 0
          %s290 = smul.addr %s21, 4
          %s291 = smul.addr %s290, 8
          %s292 = scalar_lea.hbm %s0, %s291
          %s293 = sshll.u32 %s292, 4
          %s294 = int_to_ptr.hbm [resolvable:$true] %s293
          %s295 = sshll.u32 %s287, 4
          %s296 = int_to_ptr.vmem [resolvable:$true] %s295
          %301 = dma.hbm_to_vmem [thread:$0]  %s294, 512, %s296, %s284, 128, 128, 8
        $region48: #{tpu_custom_call.1} parent=43 // pred_fallthru
          _
      $region44: #{tpu_custom_call.1} parent=5 // pred_fallthru
        _
      %p302 = scmp.le.s32.totalorder 1, %s21
      %p303 = scmp.lt.s32.totalorder %s21, 3
      %p304 = pnand %p302, %p303
      %p305 = pneg %p304
      // Predicated region
      $region49: #{tpu_custom_call.1} parent=5 // pred_check
        _
      $region50: #{tpu_custom_call.1} parent=5 // pred_check_branch
        %307 = sbr.rel (%p304) target = $region52
      $region51: #{tpu_custom_call.1} parent=5 // pred_region
        %s308 = ssub.s32 %s21, 1
        %s309 = sand.u32 %s34, 1
        %s310 = scalar_lea.sflag [#allocation3], %s309
        %s311 = sand.u32 %s34, 1
        %s312 = smul.addr %s311, 32
        %s313 = scalar_lea.vmem [#allocation2], %s312
        // Predicated region
        $region53: #{tpu_custom_call.1} parent=51 // pred_check
          %p314 = pneg %p47
        $region54: #{tpu_custom_call.1} parent=51 // pred_check_branch
          %316 = sbr.rel (%p314) target = $region56
        $region55: #{tpu_custom_call.1} parent=51 // pred_region
          %318 = dma.done %s310, 512
        $region56: #{tpu_custom_call.1} parent=51 // pred_fallthru
          _
        // Predicated region
        $region57: #{tpu_custom_call.1} parent=51 // pred_check
          %p319 = pneg %p110
        $region58: #{tpu_custom_call.1} parent=51 // pred_check_branch
          %321 = sbr.rel (%p319) target = $region60
        $region59: #{tpu_custom_call.1} parent=51 // pred_region
          %323 = dma.done [#allocation6], 256
        $region60: #{tpu_custom_call.1} parent=51 // pred_fallthru
          _
        // Predicated region
        $region61: #{tpu_custom_call.1} parent=51 // pred_check
          %p324 = pneg %p152
        $region62: #{tpu_custom_call.1} parent=51 // pred_check_branch
          %326 = sbr.rel (%p324) target = $region64
        $region63: #{tpu_custom_call.1} parent=51 // pred_region
          %328 = dma.done [#allocation6], 128
        $region64: #{tpu_custom_call.1} parent=51 // pred_fallthru
          _
        %s329 = sand.u32 %s34, 1
        %s330 = scalar_lea.sflag [#allocation3], %s329
        %s331 = sand.u32 %s34, 1
        %s332 = smul.addr %s331, 32
        %s333 = scalar_lea.vmem [#allocation2], %s332
        %p334 = pneg %p47
        %p335 = pneg %p44
        %p336 = pneg %p68
        %p337 = pneg %p65
        %p338 = pneg %p89
        %p339 = pneg %p86
        %p340 = pneg %p110
        %p341 = pneg %p107
        %p342 = pneg %p131
        %p343 = pneg %p128
        %p344 = pneg %p152
        %p345 = pneg %p149
        %p346 = pneg %p173
        %p347 = pneg %p170
        %p348 = pneg %p194
        %p349 = pneg %p191
        %p350 = pneg %p220
        %p351 = pneg %p217
        %s352 = sand.u32 %s207, 1
        %s353 = scalar_lea.sflag [#allocation4], %s352
        %s354 = sand.u32 %s207, 1
        %s355 = smul.addr %s354, 8
        %s356 = scalar_lea.vmem [#allocation8], %s355
        %v357 = vlaneseq
        %v358 = vshrl.u32 %v357, 7
        %v359 = vlaneseq
        %v360 = vand.u32 %v359, 127
        %v361 = vld [vmem:[%s313] sm:$0xff]
        %s362 = scalar_lea.vmem %s313, 8 [#allocation2]
        %v363 = vld [vmem:[%s362] sm:$0xff]
        %s364 = scalar_lea.vmem %s313, 16 [#allocation2]
        %v365 = vld [vmem:[%s364] sm:$0xff]
        %s366 = scalar_lea.vmem %s313, 24 [#allocation2]
        %v367 = vld [vmem:[%s366] sm:$0xff]
        %vm368 = vcmp.lt.s32.totalorder %v360, 4
        %369 = vrot.lane.b32.xlu0 %v363, 4
        %v370 = vpop.permute.xlu0 %369
        %v371 = vsel %vm368, -inf, %v370
        %372 = vrot.lane.b32.xlu0 %v367, 4
        %v373 = vpop.permute.xlu0 %372
        %v374 = vsel %vm368, -inf, %v373
        %v375 = vmax.f32 %v361, %v363
        %v376 = vmax.f32 %v375, %v371
        %v377 = vmax.f32 %v376, %v365
        %v378 = vmax.f32 %v377, %v367
        %v379 = vmax.f32 %v378, %v374
        %vm380 = vcmp.eq.s32.totalorder %v358, 0
        %v381 = vrot.slane %v365, 7
        %v382 = vsel %vm380, -inf, %v381
        %v383 = vmax.f32 %v379, %v382
        %v384 = vrot.slane %v367, 7
        %v385 = vsel %vm380, -inf, %v384
        %v386 = vmax.f32 %v383, %v385
        %v387 = vrot.slane %v374, 7
        %v388 = vsel %vm380, -inf, %v387
        %v389 = vmax.f32 %v386, %v388
        %v390 = vld [vmem:[%s1] sm:$0xff]
        %v391 = vld [vmem:[%s1 + $0x8] sm:$0xff]
        %v392 = vld [vmem:[%s1 + $0x10] sm:$0xff]
        %v393 = vld [vmem:[%s1 + $0x18] sm:$0xff]
        %v394 = vld [vmem:[%s1 + $0x20] sm:$0xff]
        %v395 = vld [vmem:[%s1 + $0x28] sm:$0xff]
        %v396 = vld [vmem:[%s1 + $0x30] sm:$0xff]
        %v397 = vld [vmem:[%s1 + $0x38] sm:$0xff]
        %v398 = vld [vmem:[%s1 + $0x40] sm:$0xff]
        %v399 = vld [vmem:[%s1 + $0x48] sm:$0xff]
        %v400 = vld [vmem:[%s1 + $0x50] sm:$0xff]
        %v401 = vld [vmem:[%s1 + $0x58] sm:$0xff]
        %v402 = vld [vmem:[%s1 + $0x60] sm:$0xff]
        %v403 = vld [vmem:[%s1 + $0x68] sm:$0xff]
        %v404 = vld [vmem:[%s1 + $0x70] sm:$0xff]
        %v405 = vld [vmem:[%s1 + $0x78] sm:$0xff]
        %v406 = vld [vmem:[%s2] sm:$0xff]
        %407 = vmatpush.msra.mxu0 %v405
        %408 = vmatpush.msra.mxu0 %v404
        %409 = vmatpush.msra.mxu0 %v403
        %410 = vmatpush.msra.mxu0 %v402
        %411 = vmatpush.msra.mxu0 %v401
        %412 = vmatpush.msra.mxu0 %v400
        %413 = vmatpush.msra.mxu0 %v399
        %414 = vmatpush.msra.mxu0 %v398
        %415 = vmatpush.msra.mxu0 %v397
        %416 = vmatpush.msra.mxu0 %v396
        %417 = vmatpush.msra.mxu0 %v395
        %418 = vmatpush.msra.mxu0 %v394
        %419 = vmatpush.msra.mxu0 %v393
        %420 = vmatpush.msra.mxu0 %v392
        %421 = vmatpush.msra.mxu0 %v391
        %422 = vmatpush.msra.mxu0 %v390
        %423 = vmatmul.f32.gmra.mxu0 %v389
        %v424 = vpop.f32.mrf.mxu0
        %v425 = vadd.f32 %v406, %v424
        %426 = vdwg.mxu0
        %vm427 = vcmp.lt.s32.totalorder %v360, 8
        %428 = vrot.lane.b32.xlu0 %v425, 8
        %v429 = vpop.permute.xlu0 %428
        %v430 = vsel %vm427, %v425, %v429
        %vm431 = vcmp.ge.s32.totalorder %v360, 56
        %432 = vrot.lane.b32.xlu0 %v425, 120
        %v433 = vpop.permute.xlu0 %432
        %v434 = vsel %vm431, %v425, %v433
        %v435 = vrot.slane %v430, 7
        %v436 = vsel %vm380, %v430, %v435
        %v437 = vld [vmem:[#allocation5] sm:$0x1]
        %v438 = vperm.slane %v437, 0
        %v439 = vmul.f32 %v438, %v436
        %v440 = vadd.f32 %v439, 0.0
        %v441 = vrot.slane %v425, 7
        %v442 = vsel %vm380, %v425, %v441
        %v443 = vld [vmem:[#allocation5 + $0x1] sm:$0x1]
        %v444 = vperm.slane %v443, 0
        %v445 = vmul.f32 %v444, %v442
        %v446 = vadd.f32 %v440, %v445
        %v447 = vrot.slane %v434, 7
        %v448 = vsel %vm380, %v434, %v447
        %v449 = vld [vmem:[#allocation5 + $0x2] sm:$0x1]
        %v450 = vperm.slane %v449, 0
        %v451 = vmul.f32 %v450, %v448
        %v452 = vadd.f32 %v446, %v451
        %v453 = vld [vmem:[#allocation5 + $0x3] sm:$0x1]
        %v454 = vperm.slane %v453, 0
        %v455 = vmul.f32 %v454, %v430
        %v456 = vadd.f32 %v452, %v455
        %v457 = vld [vmem:[#allocation5 + $0x4] sm:$0x1]
        %v458 = vperm.slane %v457, 0
        %v459 = vmul.f32 %v458, %v425
        %v460 = vadd.f32 %v456, %v459
        %v461 = vld [vmem:[#allocation5 + $0x5] sm:$0x1]
        %v462 = vperm.slane %v461, 0
        %v463 = vmul.f32 %v462, %v434
        %v464 = vadd.f32 %v460, %v463
        %vm465 = vcmp.eq.s32.totalorder %v358, 7
        %v466 = vrot.slane %v430, 1
        %v467 = vsel %vm465, %v430, %v466
        %v468 = vld [vmem:[#allocation5 + $0x6] sm:$0x1]
        %v469 = vperm.slane %v468, 0
        %v470 = vmul.f32 %v469, %v467
        %v471 = vadd.f32 %v464, %v470
        %v472 = vrot.slane %v425, 1
        %v473 = vsel %vm465, %v425, %v472
        %v474 = vld [vmem:[#allocation5 + $0x7] sm:$0x1]
        %v475 = vperm.slane %v474, 0
        %v476 = vmul.f32 %v475, %v473
        %v477 = vadd.f32 %v471, %v476
        %v478 = vrot.slane %v434, 1
        %v479 = vsel %vm465, %v434, %v478
        %v480 = vld [vmem:[#allocation5 + $0x8] sm:$0x1]
        %v481 = vperm.slane %v480, 0
        %v482 = vmul.f32 %v481, %v479
        %v483 = vadd.f32 %v477, %v482
        %v484 = vrot.slane %v483, 4
        %v485 = vadd.f32 %v483, %v484
        %v486 = vrot.slane %v485, 2
        %v487 = vadd.f32 %v485, %v486
        %v488 = vrot.slane %v487, 1
        %v489 = vadd.f32 %v487, %v488
        %v490 = vmul.f32 %v483, %v483
        %v491 = vrot.slane %v490, 4
        %v492 = vadd.f32 %v490, %v491
        %v493 = vrot.slane %v492, 2
        %v494 = vadd.f32 %v492, %v493
        %v495 = vrot.slane %v494, 1
        %v496 = vadd.f32 %v494, %v495
        %v497 = vld [vmem:[%s4] sm:$0xff]
        %v498 = vld [vmem:[%s4 + $0x8] sm:$0xff]
        %v499 = vld [vmem:[%s4 + $0x10] sm:$0xff]
        %v500 = vld [vmem:[%s4 + $0x18] sm:$0xff]
        %v501 = vld [vmem:[%s4 + $0x20] sm:$0xff]
        %v502 = vld [vmem:[%s4 + $0x28] sm:$0xff]
        %v503 = vld [vmem:[%s4 + $0x30] sm:$0xff]
        %v504 = vld [vmem:[%s4 + $0x38] sm:$0xff]
        %v505 = vld [vmem:[%s4 + $0x40] sm:$0xff]
        %v506 = vld [vmem:[%s4 + $0x48] sm:$0xff]
        %v507 = vld [vmem:[%s4 + $0x50] sm:$0xff]
        %v508 = vld [vmem:[%s4 + $0x58] sm:$0xff]
        %v509 = vld [vmem:[%s4 + $0x60] sm:$0xff]
        %v510 = vld [vmem:[%s4 + $0x68] sm:$0xff]
        %v511 = vld [vmem:[%s4 + $0x70] sm:$0xff]
        %v512 = vld [vmem:[%s4 + $0x78] sm:$0xff]
        %513 = vmatpush.msra.mxu0 %v512
        %514 = vmatpush.msra.mxu0 %v511
        %515 = vmatpush.msra.mxu0 %v510
        %516 = vmatpush.msra.mxu0 %v509
        %517 = vmatpush.msra.mxu0 %v508
        %518 = vmatpush.msra.mxu0 %v507
        %519 = vmatpush.msra.mxu0 %v506
        %520 = vmatpush.msra.mxu0 %v505
        %521 = vmatpush.msra.mxu0 %v504
        %522 = vmatpush.msra.mxu0 %v503
        %523 = vmatpush.msra.mxu0 %v502
        %524 = vmatpush.msra.mxu0 %v501
        %525 = vmatpush.msra.mxu0 %v500
        %526 = vmatpush.msra.mxu0 %v499
        %527 = vmatpush.msra.mxu0 %v498
        %528 = vmatpush.msra.mxu0 %v497
        %529 = vmatmul.f32.gmra.mxu0 %v489
        %v530 = vpop.f32.mrf.mxu0
        %v531 = vadd.f32 0.0, %v530
        %532 = vdwg.mxu0
        %533 = vmatpush.msra.mxu0 %v512
        %534 = vmatpush.msra.mxu0 %v511
        %535 = vmatpush.msra.mxu0 %v510
        %536 = vmatpush.msra.mxu0 %v509
        %537 = vmatpush.msra.mxu0 %v508
        %538 = vmatpush.msra.mxu0 %v507
        %539 = vmatpush.msra.mxu0 %v506
        %540 = vmatpush.msra.mxu0 %v505
        %541 = vmatpush.msra.mxu0 %v504
        %542 = vmatpush.msra.mxu0 %v503
        %543 = vmatpush.msra.mxu0 %v502
        %544 = vmatpush.msra.mxu0 %v501
        %545 = vmatpush.msra.mxu0 %v500
        %546 = vmatpush.msra.mxu0 %v499
        %547 = vmatpush.msra.mxu0 %v498
        %548 = vmatpush.msra.mxu0 %v497
        %549 = vmatmul.f32.gmra.mxu0 %v496
        %v550 = vpop.f32.mrf.mxu0
        %v551 = vadd.f32 0.0, %v550
        %552 = vdwg.mxu0
        %v553 = vmul.f32 %v531, 0.015625
        %v554 = vmul.f32 %v551, 0.015625
        %v555 = vmul.f32 %v553, %v553
        %v556 = vsub.f32 %v554, %v555
        %v557 = vadd.f32 %v556, 1e-05
        %v558 = vrsqrt.pop %v557
        %v559 = vmul.f32 %v558, %v557
        %v560 = vmul.f32 %v559, %v558
        %v561 = vmul.f32 0.5, %v560
        %v562 = vsub.f32 1.5, %v561
        %v563 = vmul.f32 %v558, %v562
        %vm564 = vweird.f32 %v557
        %vm565 = vweird.f32 %v558
        %vm566 = vmor %vm564, %vm565
        %v567 = vsel %vm566, %v558, %v563
        %v568 = vld [vmem:[#allocation7] sm:$0xff]
        %vm569 = vcmask 64512
        %v571 = vsel %vm569, %v553, 0
        %573 = vmatpush.msra.mxu0 0.0
        %574 = vmatpush.msra.mxu0 0.0
        %575 = vmatpush.msra.mxu0 0.0
        %576 = vmatpush.msra.mxu0 0.0
        %577 = vmatpush.msra.mxu0 0.0
        %578 = vmatpush.msra.mxu0 0.0
        %579 = vmatpush.msra.mxu0 0.0
        %580 = vmatpush.msra.mxu0 0.0
        %581 = vmatpush.msra.mxu0 0.0
        %582 = vmatpush.msra.mxu0 0.0
        %583 = vmatpush.msra.mxu0 0.0
        %584 = vmatpush.msra.mxu0 0.0
        %585 = vmatpush.msra.mxu0 0.0
        %586 = vmatpush.msra.mxu0 0.0
        %587 = vmatpush.msra.mxu0 0.0
        %588 = vmatpush.msra.mxu0 %v568
        %589 = vmatmul.f32.gmra.mxu0 %v571
        %v590 = vpop.f32.mrf.mxu0
        %v591 = vadd.f32 0.0, %v590
        %592 = vdwg.mxu0
        %v594 = vsel %vm569, %v567, 0
        %596 = vmatpush.msra.mxu0 0.0
        %597 = vmatpush.msra.mxu0 0.0
        %598 = vmatpush.msra.mxu0 0.0
        %599 = vmatpush.msra.mxu0 0.0
        %600 = vmatpush.msra.mxu0 0.0
        %601 = vmatpush.msra.mxu0 0.0
        %602 = vmatpush.msra.mxu0 0.0
        %603 = vmatpush.msra.mxu0 0.0
        %604 = vmatpush.msra.mxu0 0.0
        %605 = vmatpush.msra.mxu0 0.0
        %606 = vmatpush.msra.mxu0 0.0
        %607 = vmatpush.msra.mxu0 0.0
        %608 = vmatpush.msra.mxu0 0.0
        %609 = vmatpush.msra.mxu0 0.0
        %610 = vmatpush.msra.mxu0 0.0
        %611 = vmatpush.msra.mxu0 %v568
        %612 = vmatmul.f32.gmra.mxu0 %v594
        %v613 = vpop.f32.mrf.mxu0
        %v614 = vadd.f32 0.0, %v613
        %615 = vdwg.mxu0
        %v616 = vld [vmem:[%s6] sm:$0x1]
        %v617 = vmul.f32 %v614, %v616
        %v618 = vld [vmem:[%s7] sm:$0x1]
        %v619 = vmul.f32 %v591, %v617
        %v620 = vsub.f32 %v618, %v619
        %v621 = vperm.slane %v617, 0
        %v622 = vmul.f32 %v483, %v621
        %v624 = vperm.slane %v620, 0
        %v626 = vadd.f32 %v622, %v624
        %v627 = vmul.f32 %v626, 0.5
        %v628 = vmul.f32 %v626, 0.70710677
        %v629 = vand.u32 2147483647, %v628
        %v630 = vmul.f32 %v629, 0.3275911
        %v631 = vadd.f32 %v630, 1.0
        %v632 = vrcp.pop %v631
        %v633 = vmul.f32 %v631, %v632
        %v634 = vsub.f32 1.0, %v633
        %v635 = vmul.f32 %v632, %v634
        %v636 = vadd.f32 %v632, %v635
        %vm637 = vweird.f32 %v631
        %vm638 = vweird.f32 %v632
        %vm639 = vmor %vm637, %vm638
        %v640 = vsel %vm639, %v632, %v636
        %v641 = vand.u32 2147483647, %v631
        %vm642 = vcmp.eq.f32.partialorder %v641, 8.507059e+37
        %v643 = vand.u32 %v631, 2147483648
        %v644 = vor.u32 1.1754944e-38, %v643
        %v645 = vsel %vm642, %v644, %v640
        %v646 = vmul.f32 1.0, %v645
        %v647 = vmul.f32 %v646, 1.0614054
        %v648 = vadd.f32 %v647, -1.4531521
        %v649 = vmul.f32 %v648, %v646
        %v650 = vadd.f32 %v649, 1.4214138
        %v651 = vmul.f32 %v650, %v646
        %v652 = vadd.f32 %v651, -0.28449672
        %v653 = vmul.f32 %v652, %v646
        %v654 = vadd.f32 %v653, 0.2548296
        %v655 = vmul.f32 %v654, %v646
        %v656 = vsub.f32 0.0, %v629
        %v657 = vmul.f32 %v656, %v629
        %v658 = vmul.f32 %v657, 1.442695
        %v659 = vpow.pop %v658
        %v660 = vmul.f32 %v655, %v659
        %v661 = vsub.f32 1.0, %v660
        %vm662 = vcmp.ge.f32.partialorder %v628, 0.0
        %v663 = vsub.f32 0.0, %v661
        %v664 = vsel %vm662, %v661, %v663
        %v665 = vadd.f32 %v664, 1.0
        %v666 = vmul.f32 %v627, %v665
        %667 = vst [vmem:[%s356] sm:$0xff] %v666
        %s668 = sand.u32 %s207, 1
        %s669 = scalar_lea.sflag [#allocation4], %s668
        %s670 = sand.u32 %s207, 1
        %s671 = smul.addr %s670, 8
        %s672 = scalar_lea.vmem [#allocation8], %s671
        // Predicated region
        $region65: #{tpu_custom_call.1} parent=51 // pred_check
          %p673 = pneg %p217
        $region66: #{tpu_custom_call.1} parent=51 // pred_check_branch
          %675 = sbr.rel (%p673) target = $region68
        $region67: #{tpu_custom_call.1} parent=51 // pred_region
          %677 = vsyncadd %s669, 0
          %s678 = smul.addr %s26, 8
          %s679 = scalar_lea.hbm %s8, %s678
          %s681 = sshll.u32 %s672, 4
          %s682 = int_to_ptr.vmem [resolvable:$true] %s681
          %s683 = sshll.u32 %s679, 4
          %s684 = int_to_ptr.hbm [resolvable:$true] %s683
          %686 = dma.vmem_to_hbm [thread:$0]  %s682, 128, %s684, %s669
        $region68: #{tpu_custom_call.1} parent=51 // pred_fallthru
          _
      $region52: #{tpu_custom_call.1} parent=5 // pred_fallthru
        _
      %p687 = scmp.le.s32.totalorder 2, %s21
      // Predicated region
      $region69: #{tpu_custom_call.1} parent=5 // pred_check
        %p688 = pneg %p687
      $region70: #{tpu_custom_call.1} parent=5 // pred_check_branch
        %690 = sbr.rel (%p688) target = $region72
      $region71: #{tpu_custom_call.1} parent=5 // pred_region
        %s691 = ssub.s32 %s21, 2
        // Predicated region
        $region73: #{tpu_custom_call.1} parent=71 // pred_check
          %p692 = pneg %p223
        $region74: #{tpu_custom_call.1} parent=71 // pred_check_branch
          %694 = sbr.rel (%p692) target = $region76
        $region75: #{tpu_custom_call.1} parent=71 // pred_region
          %s695 = sand.u32 %s208, 1
          %s696 = scalar_lea.sflag [#allocation4], %s695
          %s697 = sand.u32 %s208, 1
          %s698 = smul.addr %s697, 8
          %s699 = scalar_lea.vmem [#allocation8], %s698
          %701 = dma.done %s696, 128
        $region76: #{tpu_custom_call.1} parent=71 // pred_fallthru
          _
      $region72: #{tpu_custom_call.1} parent=5 // pred_fallthru
        _
    $region6: #{tpu_custom_call.1} parent=1 // loop_footer
      %s25 = sadd.s32 1, %s21
    $region7: #{tpu_custom_call.1} parent=1 // loop_footer_branch
      %20 = sbr.rel target = $region3
    $region8: #{tpu_custom_call.1} parent=1 // loop_exit
      _
    %702 = vsyncpa [#allocation3], 1
    %s703 = scalar_lea.sflag [#allocation3], 1
    %704 = vsyncpa %s703, 1
    %705 = vsyncpa [#allocation6], 1
    %706 = vsyncpa [#allocation4], 1
    %s707 = scalar_lea.sflag [#allocation4], 1
    %708 = vsyncpa %s707, 1

</llo_original>
